<compile_context>
chip_gen: v5e
topology: v5e:2x2
jax: 0.10.0
libtpu: 0.0.40
codegen_flags: <defaults>
</compile_context>

<pallas_src>
import functools
import math

import jax
import jax.numpy as jnp
from jax.experimental import pallas as pl
from jax.experimental.pallas import tpu as pltpu


def _round_up(x, m):
    return -(-x // m) * m


def _out_pack_factor(d):
    """How many batch rows to pack per 128-lane output row (lane-dense vst)."""
    if d % 128 == 0:
        return 1
    k = 128 // math.gcd(d, 128)
    return k if k <= 16 else 1


def _choose_tiling(B, S, D, H, x_itemsize, *, out_pack,
                   target_block_bytes, vmem_budget_bytes):
    """Pick TB (batch rows per grid step) and the padded batch size B_pad.

    D and H are tiny, so the kernel is HBM-bandwidth / per-step-overhead
    bound: TB is sized from the DMA block size and a conservative VMEM budget
    (safe on v7x's 64 MiB physical VMEM), not from MXU row counts.  Large
    problems always get an even number of grid steps (>= 2) so both
    TensorCores of a v7x / megacore chip get work via the 'parallel' axis.
    """
    s_pad = _round_up(S, 8)
    d_pad = _round_up(D, 128)          # lane padding in VMEM
    h_pad = _round_up(H, 128)

    hbm_per_b = S * D * x_itemsize                      # HBM bytes DMA'd per batch row
    vmem_per_b = (2 * s_pad * d_pad * x_itemsize        # double-buffered x block
                  + 2 * s_pad * h_pad * 4               # fc1 activation + fc2 product (f32)
                  + 2 * s_pad * d_pad * 4)              # pooling temporaries (f32)

    align = 8 * out_pack                                # keeps every BlockSpec (8,128)-legal
    tb_cap = min(target_block_bytes // max(hbm_per_b, 1),
                 vmem_budget_bytes // max(vmem_per_b, 1))
    tb_cap = max(align, (tb_cap // align) * align)

    # Tiny problems: one grid step over the whole batch (per-step overhead and
    # the fixed weight DMAs dominate; nothing useful to shard).
    if (B <= 16 or B * hbm_per_b <= 256 * 1024) and B <= tb_cap:
        return B, B

    # Large problems: biggest block within budget, even step count >= 2.
    steps = max(2, -(-B // tb_cap))
    if steps % 2:
        steps += 1
    tb = _round_up(-(-B // steps), align)
    return tb, steps * tb


def _additive_attn_kernel(x_ref, mask_ref, w1_ref, b1_ref, w2_ref, b2_ref, o_ref,
                          *, out_pack, approx_recip):
    tb, s, d = x_ref.shape                       # static block shape

    x = x_ref[...]                               # (TB, S, D), f32 or bf16
    # Leading-dim merge; layout-free because the wrapper pads S to a multiple of 8.
    x2d = x.reshape(tb * s, d)

    # ---- fc1 + tanh on the MXU (bf16 or f32 operands, f32 accumulation) -------
    e = jnp.tanh(
        jnp.dot(x2d, w1_ref[...], preferred_element_type=jnp.float32)
        + b1_ref[...]
    )                                            # (TB*S, H) f32

    # ---- fc2 as a VPU multiply + lane reduction; score stays lane-dense (TB,S)
    h = e.shape[-1]
    score = jnp.sum(e.reshape(tb, s, h) * w2_ref[...], axis=-1) + b2_ref[0]

    # ---- exp + multiplicative mask + normalize over S (matches the PyTorch
    #      reference exactly: no max-subtraction, +1e-8 denominator) -----------
    alpha = jnp.exp(score) * mask_ref[...]                       # (TB, S)
    denom = jnp.sum(alpha, axis=-1, keepdims=True) + 1e-8        # (TB, 1)
    if approx_recip:
        alpha = alpha * pl.reciprocal(denom, approx=True)        # EUP slot
    else:
        alpha = alpha / denom                                    # exact f32 path

    # ---- pooled output: VPU broadcast-multiply + sublane (XLU) reduce over S.
    #      No block-diagonal matmul -> no O(TB^2 * S) intermediate. -------------
    pooled = jnp.sum(alpha[:, :, None] * x.astype(jnp.float32), axis=1)  # (TB, D) f32

    # ---- lane-dense store: pack `out_pack` batch rows per 128-lane output row.
    if out_pack > 1:
        pooled = pooled.reshape(tb // out_pack, out_pack * d)
    o_ref[...] = pooled.astype(o_ref.dtype)


def additive_attention(x, w1, b1, w2, b2, attn_mask=None, *,
                       bf16_matmul=True,
                       target_block_bytes=2 << 20,
                       vmem_budget_bytes=20 << 20):
    """x: (B, S, D); attn_mask: (B, S) or None.  Returns (B, D) f32.

    bf16_matmul=True casts x/w1 to bf16 at the call boundary (halves HBM
    traffic, MXU bf16 peak); set False for bit-accurate f32 verification.
    """
    B, S, D = x.shape
    H = w1.shape[1]

    compute_dtype = jnp.bfloat16 if bf16_matmul else jnp.float32
    x_in = x.astype(compute_dtype)
    w1_in = w1.astype(compute_dtype)

    if attn_mask is None:
        mask = jnp.ones((B, S), dtype=jnp.float32)
    else:
        mask = attn_mask.astype(jnp.float32)

    # Pad S to a multiple of 8 (zero x rows, zero mask) so the in-kernel
    # (TB, S, D) -> (TB*S, D) reshape never materializes a relayout copy.
    S_pad = _round_up(S, 8)
    if S_pad != S:
        x_in = jnp.pad(x_in, ((0, 0), (0, S_pad - S), (0, 0)))
        mask = jnp.pad(mask, ((0, 0), (0, S_pad - S)))

    out_pack = _out_pack_factor(D)
    TB, B_pad = _choose_tiling(B, S_pad, D, H, x_in.dtype.itemsize,
                               out_pack=out_pack,
                               target_block_bytes=target_block_bytes,
                               vmem_budget_bytes=vmem_budget_bytes)
    if TB % out_pack != 0:        # tiny single-step batches: skip output packing
        out_pack = 1

    if B_pad != B:
        # Padded rows carry mask=0 and x=0 -> alpha=0 -> zero output rows.
        x_in = jnp.pad(x_in, ((0, B_pad - B), (0, 0), (0, 0)))
        mask = jnp.pad(mask, ((0, B_pad - B), (0, 0)))

    w2_row = w2.reshape(1, H).astype(jnp.float32)            # fc2 weight, lane-dense row
    b1_2d = b1.reshape(1, H).astype(jnp.float32)
    b2_1d = jnp.asarray(b2, dtype=jnp.float32).reshape(1)    # scalar -> SMEM

    kernel = functools.partial(_additive_attn_kernel,
                               out_pack=out_pack,
                               approx_recip=bool(bf16_matmul))

    out = pl.pallas_call(
        kernel,
        out_shape=jax.ShapeDtypeStruct((B_pad // out_pack, out_pack * D), jnp.float32),
        grid_spec=pltpu.PrefetchScalarGridSpec(
            num_scalar_prefetch=0,
            grid=(B_pad // TB,),
            in_specs=[
                pl.BlockSpec((TB, S_pad, D), lambda b: (b, 0, 0)),        # x
                pl.BlockSpec((TB, S_pad), lambda b: (b, 0)),              # mask
                pl.BlockSpec((D, H), lambda b: (0, 0)),                   # w1 (resident)
                pl.BlockSpec((1, H), lambda b: (0, 0)),                   # b1
                pl.BlockSpec((1, H), lambda b: (0, 0)),                   # w2 row
                pl.BlockSpec(memory_space=pltpu.MemorySpace.SMEM),        # b2 scalar
            ],
            out_specs=pl.BlockSpec((TB // out_pack, out_pack * D), lambda b: (b, 0)),
        ),
        compiler_params=pltpu.CompilerParams(
            dimension_semantics=("parallel",),
            vmem_limit_bytes=32 * 1024 * 1024,
        ),
    )(x_in, mask, w1_in, b1_2d, w2_row, b2_1d)

    return out.reshape(B_pad, D)[:B]


def _reference(x, w1, b1, w2, b2, attn_mask=None):
    """Pure-JAX replica of the PyTorch forward (for verification)."""
    e = jnp.tanh(x @ w1 + b1)                      # (B, S, H)
    alpha = jnp.exp(e @ w2 + b2)                   # (B, S, 1)
    if attn_mask is not None:
        alpha = alpha * attn_mask[..., None]
    alpha = alpha / (jnp.sum(alpha, axis=1, keepdims=True) + 1e-8)
    return jnp.einsum("bsd,bso->bd", x, alpha)     # x^T @ alpha, squeezed


if __name__ == "__main__":
    B, S, D, H = 2, 8, 32, 32   # batch, candidate_size, d_h, hidden_size

    key = jax.random.PRNGKey(0)
    kx, km, kw1, kb1, kw2, kb2 = jax.random.split(key, 6)

    x = jax.random.normal(kx, (B, S, D), dtype=jnp.float32)
    attn_mask = (jax.random.uniform(km, (B, S)) > 0.2).astype(jnp.float32)

    # nn.Linear(d_h, H) / nn.Linear(H, 1) weights, stored pre-transposed.
    w1 = jax.random.normal(kw1, (D, H), dtype=jnp.float32) * 0.1
    b1 = jax.random.normal(kb1, (H,), dtype=jnp.float32) * 0.1
    w2 = jax.random.normal(kw2, (H, 1), dtype=jnp.float32) * 0.1
    b2 = jax.random.normal(kb2, (1,), dtype=jnp.float32) * 0.1

    # 1) Tiny batch, exact f32 path, single grid step (out_pack falls back to 1).
    out = jax.block_until_ready(
        additive_attention(x, w1, b1, w2, b2, attn_mask, bf16_matmul=False))
    ref = _reference(x, w1, b1, w2, b2, attn_mask)
    assert out.shape == (B, D)
    err = float(jnp.max(jnp.abs(out - ref)))
    assert jnp.allclose(out, ref, atol=2e-5, rtol=2e-5), f"f32 single-step max err {err}"

    # 2) f32 path with deliberately small blocks to exercise the tiled machinery
    #    at test-friendly sizes: multi-step even grid, batch padding, lane-dense
    #    packed output (out_pack=4).  Production default is 2 MiB blocks.
    B2 = 100
    kx2, km2 = jax.random.split(jax.random.PRNGKey(1), 2)
    x2 = jax.random.normal(kx2, (B2, S, D), dtype=jnp.float32)
    m2 = (jax.random.uniform(km2, (B2, S)) > 0.2).astype(jnp.float32)
    out2 = jax.block_until_ready(
        additive_attention(x2, w1, b1, w2, b2, m2, bf16_matmul=False,
                           target_block_bytes=64 * 1024))
    ref2 = _reference(x2, w1, b1, w2, b2, m2)
    assert out2.shape == (B2, D)
    err2 = float(jnp.max(jnp.abs(out2 - ref2)))
    assert jnp.allclose(out2, ref2, atol=2e-5, rtol=2e-5), f"f32 tiled max err {err2}"

    # 3) Default fast path (bf16 operands + approx reciprocal), odd S (padded to
    #    8 in the wrapper), multi-step grid with batch padding.
    B3, S3 = 333, 6
    kx3, km3 = jax.random.split(jax.random.PRNGKey(2), 2)
    x3 = jax.random.normal(kx3, (B3, S3, D), dtype=jnp.float32)
    m3 = (jax.random.uniform(km3, (B3, S3)) > 0.2).astype(jnp.float32)
    out3 = jax.block_until_ready(
        additive_attention(x3, w1, b1, w2, b2, m3, target_block_bytes=64 * 1024))
    ref3 = _reference(x3, w1, b1, w2, b2, m3)
    assert out3.shape == (B3, D)
    err3 = float(jnp.max(jnp.abs(out3 - ref3)))
    assert jnp.allclose(out3, ref3, atol=3e-2, rtol=3e-2), f"bf16 tiled max err {err3}"

    print("KERNEL_OK")
</pallas_src>

<mosaic_0001>
module attributes {stable_mosaic.version = 11 : i64} {
  func.func @_additive_attn_kernel(%arg0: i32, %arg1: memref<2x8x32xf32, #tpu.memory_space<vmem>>, %arg2: memref<2x8xf32, #tpu.memory_space<vmem>>, %arg3: memref<32x32xf32, #tpu.memory_space<vmem>>, %arg4: memref<1x32xf32, #tpu.memory_space<vmem>>, %arg5: memref<1x32xf32, #tpu.memory_space<vmem>>, %arg6: memref<1xf32, #tpu.memory_space<smem>>, %arg7: memref<2x32xf32, #tpu.memory_space<vmem>>) attributes {dimension_semantics = [#tpu.dimension_semantics<parallel>], iteration_bounds = array<i64: 1>, scalar_prefetch = 0 : i64, scratch_operands = 0 : i64, tpu.core_type = #tpu.core_type<tc>, window_params = [{transform_indices = @transform_0, window_bounds = array<i64: 2, 8, 32>}, {transform_indices = @transform_1, window_bounds = array<i64: 2, 8>}, {pipeline_mode = #tpu.pipeline_mode<synchronous>, transform_indices = @transform_2, window_bounds = array<i64: 32, 32>}, {pipeline_mode = #tpu.pipeline_mode<synchronous>, transform_indices = @transform_3, window_bounds = array<i64: 1, 32>}, {pipeline_mode = #tpu.pipeline_mode<synchronous>, transform_indices = @transform_4, window_bounds = array<i64: 1, 32>}, {transform_indices = @transform_5, window_bounds = array<i64: 1>}, {transform_indices = @transform_6, window_bounds = array<i64: 2, 32>}]} {
    %c0 = arith.constant 0 : index
    %c0_0 = arith.constant 0 : index
    %c0_1 = arith.constant 0 : index
    %0 = vector.load %arg1[%c0, %c0_0, %c0_1] : memref<2x8x32xf32, #tpu.memory_space<vmem>>, vector<2x8x32xf32>
    %1 = vector.shape_cast %0 : vector<2x8x32xf32> to vector<16x32xf32>
    %c0_2 = arith.constant 0 : index
    %c0_3 = arith.constant 0 : index
    %2 = vector.load %arg3[%c0_2, %c0_3] : memref<32x32xf32, #tpu.memory_space<vmem>>, vector<32x32xf32>
    %cst = arith.constant dense<0.000000e+00> : vector<16x32xf32>
    %3 = tpu.matmul %1, %2, %cst {dimension_numbers = #tpu.dot_dimension_numbers<[1], [0], [0], [1], [0, 0, 1, 1], [], []>} : vector<16x32xf32>, vector<32x32xf32>, vector<16x32xf32> -> vector<16x32xf32>
    %c0_4 = arith.constant 0 : index
    %c0_5 = arith.constant 0 : index
    %4 = vector.load %arg4[%c0_4, %c0_5] : memref<1x32xf32, #tpu.memory_space<vmem>>, vector<1x32xf32>
    %5 = vector.broadcast %4 : vector<1x32xf32> to vector<16x32xf32>
    %6 = arith.addf %3, %5 : vector<16x32xf32>
    %7 = math.tanh %6 : vector<16x32xf32>
    %8 = vector.shape_cast %7 : vector<16x32xf32> to vector<2x8x32xf32>
    %c0_6 = arith.constant 0 : index
    %c0_7 = arith.constant 0 : index
    %9 = vector.load %arg5[%c0_6, %c0_7] : memref<1x32xf32, #tpu.memory_space<vmem>>, vector<1x32xf32>
    %10 = vector.shape_cast %9 : vector<1x32xf32> to vector<1x1x32xf32>
    %11 = vector.broadcast %10 : vector<1x1x32xf32> to vector<2x8x32xf32>
    %12 = arith.mulf %8, %11 : vector<2x8x32xf32>
    %cst_8 = arith.constant dense<0.000000e+00> : vector<2x8xf32>
    %13 = vector.multi_reduction <add>, %12, %cst_8 [2] : vector<2x8x32xf32> to vector<2x8xf32>
    %c0_9 = arith.constant 0 : index
    %14 = memref.load %arg6[%c0_9] : memref<1xf32, #tpu.memory_space<smem>>
    %15 = vector.broadcast %14 : f32 to vector<2x8xf32>
    %16 = arith.addf %13, %15 : vector<2x8xf32>
    %17 = math.exp %16 : vector<2x8xf32>
    %c0_10 = arith.constant 0 : index
    %c0_11 = arith.constant 0 : index
    %18 = vector.load %arg2[%c0_10, %c0_11] : memref<2x8xf32, #tpu.memory_space<vmem>>, vector<2x8xf32>
    %19 = arith.mulf %17, %18 : vector<2x8xf32>
    %cst_12 = arith.constant dense<0.000000e+00> : vector<2xf32>
    %20 = vector.multi_reduction <add>, %19, %cst_12 [1] : vector<2x8xf32> to vector<2xf32>
    %21 = vector.shape_cast %20 : vector<2xf32> to vector<2x1xf32>
    %cst_13 = arith.constant 9.99999993E-9 : f32
    %22 = vector.broadcast %cst_13 : f32 to vector<2x1xf32>
    %23 = arith.addf %21, %22 : vector<2x1xf32>
    %24 = vector.broadcast %23 : vector<2x1xf32> to vector<2x8xf32>
    %25 = arith.divf %19, %24 : vector<2x8xf32>
    %26 = vector.shape_cast %25 : vector<2x8xf32> to vector<2x8x1xf32>
    %27 = vector.broadcast %26 : vector<2x8x1xf32> to vector<2x8x32xf32>
    %28 = arith.mulf %27, %0 : vector<2x8x32xf32>
    %cst_14 = arith.constant dense<0.000000e+00> : vector<2x32xf32>
    %29 = vector.multi_reduction <add>, %28, %cst_14 [1] : vector<2x8x32xf32> to vector<2x32xf32>
    %c0_15 = arith.constant 0 : index
    %c0_16 = arith.constant 0 : index
    %30 = vector.load %arg7[%c0_15, %c0_16] : memref<2x32xf32, #tpu.memory_space<vmem>>, vector<2x32xf32>
    tpu.vector_store %arg7[%c0_15, %c0_16], %29 {strides = array<i32>} : memref<2x32xf32, #tpu.memory_space<vmem>>, vector<2x32xf32>,
    return
  }
  func.func @transform_0(%arg0: i32) -> (i32, i32, i32) {
    %c0_i32 = arith.constant 0 : i32
    %c0_i32_0 = arith.constant 0 : i32
    %c0_i32_1 = arith.constant 0 : i32
    return %arg0, %c0_i32, %c0_i32_0 : i32, i32, i32
  }
  func.func @transform_1(%arg0: i32) -> (i32, i32) {
    %c0_i32 = arith.constant 0 : i32
    %c0_i32_0 = arith.constant 0 : i32
    return %arg0, %c0_i32 : i32, i32
  }
  func.func @transform_2(%arg0: i32) -> (i32, i32) {
    %c0_i32 = arith.constant 0 : i32
    %c0_i32_0 = arith.constant 0 : i32
    %c0_i32_1 = arith.constant 0 : i32
    return %c0_i32, %c0_i32_0 : i32, i32
  }
  func.func @transform_3(%arg0: i32) -> (i32, i32) {
    %c0_i32 = arith.constant 0 : i32
    %c0_i32_0 = arith.constant 0 : i32
    %c0_i32_1 = arith.constant 0 : i32
    return %c0_i32, %c0_i32_0 : i32, i32
  }
  func.func @transform_4(%arg0: i32) -> (i32, i32) {
    %c0_i32 = arith.constant 0 : i32
    %c0_i32_0 = arith.constant 0 : i32
    %c0_i32_1 = arith.constant 0 : i32
    return %c0_i32, %c0_i32_0 : i32, i32
  }
  func.func @transform_5(%arg0: i32) -> i32 {
    %c0_i32 = arith.constant 0 : i32
    %c0_i32_0 = arith.constant 0 : i32
    return %c0_i32 : i32
  }
  func.func @transform_6(%arg0: i32) -> (i32, i32) {
    %c0_i32 = arith.constant 0 : i32
    %c0_i32_0 = arith.constant 0 : i32
    return %arg0, %c0_i32 : i32, i32
  }
}

</mosaic_0001>

<llo_original>
// kernel: tpu_custom_call.1
$region0: #{tpu_custom_call.1}
  #allocation0 [shape = 'u32[]', space=smem, size = 0x4, offset = 0x4, fixed_abs, tag = 'smem constant byte address 0x4 - core index']
  #allocation1 [shape = 'u32[72,128]{1,0:T(1,128)}', space=vmem, size = 0x9000, scoped, tag = 'internal scratch']
  #allocation2 [shape = 'f32[1]{0:T(128)S(6)}', space=smem, size = 0x200, scoped, tag = 'scoped memory for tpu_custom_call.1']
  %s0 = inlined_call_operand.hbm [shape: f32[2,8,32], index: 0, kind: input, shape index: {}]
  %s1 = inlined_call_operand.vmem [shape: f32[2,8], index: 1, kind: input, shape index: {}]
  %s2 = inlined_call_operand.hbm [shape: f32[32,32], index: 2, kind: input, shape index: {}]
  %s3 = inlined_call_operand.vmem [shape: f32[1,32], index: 3, kind: input, shape index: {}]
  %s4 = inlined_call_operand.vmem [shape: f32[1,32], index: 4, kind: input, shape index: {}]
  %s5 = inlined_call_operand.<no memory space> [shape: f32[1], index: 5, kind: input, shape index: {}]
  %s6 = inlined_call_operand.hbm [shape: f32[2,32], index: 6, kind: output, shape index: {}]
  %s7 = sld [smem:[#allocation0]]
  $region42: #{tpu_custom_call.1} parent=0
    _
  %s9 = ssub.s32 1, %s7
  %s10 = scalar_select 0, %s9, %s7
  %11 = sst [smem:[#allocation2]] %s5
  $region1: #{tpu_custom_call.1} parent=0
    #allocation3 [shape = 'u8[8192]{0}', space=vmem, size = 0x2000, scoped, tag = 'input window, operand 0, single buffered']
    #allocation4 [shape = 's32[1]{0}', space=sflag, size = 0x4, scoped, tag = 'scoped memory for tpu_custom_call.1']
    #allocation5 [shape = 's32[1]{0}', space=sflag, size = 0x4, scoped, tag = 'scoped memory for tpu_custom_call.1']
    #allocation6 [shape = 'u8[16384]{0}', space=vmem, size = 0x4000, scoped, tag = 'input window, operand 2, single buffered']
    #allocation7 [shape = 's32[1]{0}', space=sflag, size = 0x4, scoped, tag = 'scoped memory for tpu_custom_call.1']
    #allocation8 [shape = 'u8[1024]{0}', space=vmem, size = 0x400, scoped, tag = 'output window, operand 0, single buffered']
    %12 = vsyncpa [#allocation4], 0
    %13 = vsyncpa [#allocation7], 0
    %14 = vsyncpa [#allocation5], 0
    // Predicated region
    $region2: #{tpu_custom_call.1} parent=1 // pred_check
      _
    $region3: #{tpu_custom_call.1} parent=1 // pred_check_branch
      %16 = sbr.rel (0) target = $region5
    $region4: #{tpu_custom_call.1} parent=1 // pred_region
      %18 = vsyncadd [#allocation4], 0
      %s19 = sshll.u32 %s0, 4
      %s20 = int_to_ptr.hbm [resolvable:$true] %s19
      %s21 = sshll.u32 [#allocation3], 4
      %s22 = int_to_ptr.vmem [resolvable:$true] %s21
      %27 = dma.hbm_to_vmem [thread:$0]  %s20, 256, %s22, [#allocation4], 128, 128, 8
    $region5: #{tpu_custom_call.1} parent=1 // pred_fallthru
      _
    // Predicated region
    $region6: #{tpu_custom_call.1} parent=1 // pred_check
      _
    $region7: #{tpu_custom_call.1} parent=1 // pred_check_branch
      %29 = sbr.rel (0) target = $region9
    $region8: #{tpu_custom_call.1} parent=1 // pred_region
      _
    $region9: #{tpu_custom_call.1} parent=1 // pred_fallthru
      _
    // Predicated region
    $region10: #{tpu_custom_call.1} parent=1 // pred_check
      _
    $region11: #{tpu_custom_call.1} parent=1 // pred_check_branch
      %31 = sbr.rel (0) target = $region13
    $region12: #{tpu_custom_call.1} parent=1 // pred_region
      %33 = vsyncadd [#allocation7], 0
      %s34 = sshll.u32 %s2, 4
      %s35 = int_to_ptr.hbm [resolvable:$true] %s34
      %s36 = sshll.u32 [#allocation6], 4
      %s37 = int_to_ptr.vmem [resolvable:$true] %s36
      %42 = dma.hbm_to_vmem [thread:$0]  %s35, 512, %s37, [#allocation7], 128, 128, 8
    $region13: #{tpu_custom_call.1} parent=1 // pred_fallthru
      _
    // Predicated region
    $region14: #{tpu_custom_call.1} parent=1 // pred_check
      _
    $region15: #{tpu_custom_call.1} parent=1 // pred_check_branch
      %44 = sbr.rel (0) target = $region17
    $region16: #{tpu_custom_call.1} parent=1 // pred_region
      _
    $region17: #{tpu_custom_call.1} parent=1 // pred_fallthru
      _
    // Predicated region
    $region18: #{tpu_custom_call.1} parent=1 // pred_check
      _
    $region19: #{tpu_custom_call.1} parent=1 // pred_check_branch
      %46 = sbr.rel (0) target = $region21
    $region20: #{tpu_custom_call.1} parent=1 // pred_region
      _
    $region21: #{tpu_custom_call.1} parent=1 // pred_fallthru
      _
    // Predicated region
    $region22: #{tpu_custom_call.1} parent=1 // pred_check
      _
    $region23: #{tpu_custom_call.1} parent=1 // pred_check_branch
      %48 = sbr.rel (0) target = $region25
    $region24: #{tpu_custom_call.1} parent=1 // pred_region
      _
    $region25: #{tpu_custom_call.1} parent=1 // pred_fallthru
      _
    // Predicated region
    $region26: #{tpu_custom_call.1} parent=1 // pred_check
      _
    $region27: #{tpu_custom_call.1} parent=1 // pred_check_branch
      %50 = sbr.rel (0) target = $region29
    $region28: #{tpu_custom_call.1} parent=1 // pred_region
      %52 = dma.done [#allocation4], 256
    $region29: #{tpu_custom_call.1} parent=1 // pred_fallthru
      _
    // Predicated region
    $region30: #{tpu_custom_call.1} parent=1 // pred_check
      _
    $region31: #{tpu_custom_call.1} parent=1 // pred_check_branch
      %54 = sbr.rel (0) target = $region33
    $region32: #{tpu_custom_call.1} parent=1 // pred_region
      %56 = dma.done [#allocation7], 512
    $region33: #{tpu_custom_call.1} parent=1 // pred_fallthru
      _
    %v57 = vld [vmem:[#allocation3] sm:$0xff]
    %v58 = vld [vmem:[#allocation3 + $0x8] sm:$0xff]
    %v59 = vld [vmem:[#allocation6] sm:$0xff]
    %v60 = vld [vmem:[#allocation6 + $0x8] sm:$0xff]
    %v61 = vld [vmem:[#allocation6 + $0x10] sm:$0xff]
    %v62 = vld [vmem:[#allocation6 + $0x18] sm:$0xff]
    %v63 = vld [vmem:[%s3] sm:$0x1]
    %v65 = vperm.slane %v63, 0
    %vm67 = vcmask 261120
    %v69 = vsel %vm67, %v57, 0
    %v72 = vsel %vm67, %v58, 0
    %74 = vmatpush.msra.mxu0 0.0
    %75 = vmatpush.msra.mxu0 0.0
    %76 = vmatpush.msra.mxu0 0.0
    %77 = vmatpush.msra.mxu0 0.0
    %78 = vmatpush.msra.mxu0 0.0
    %79 = vmatpush.msra.mxu0 0.0
    %80 = vmatpush.msra.mxu0 0.0
    %81 = vmatpush.msra.mxu0 0.0
    %82 = vmatpush.msra.mxu0 0.0
    %83 = vmatpush.msra.mxu0 0.0
    %84 = vmatpush.msra.mxu0 0.0
    %85 = vmatpush.msra.mxu0 0.0
    %86 = vmatpush.msra.mxu0 %v62
    %87 = vmatpush.msra.mxu0 %v61
    %88 = vmatpush.msra.mxu0 %v60
    %89 = vmatpush.msra.mxu0 %v59
    %90 = vmatmul.f32.gmra.mxu0 %v69
    %v91 = vpop.f32.mrf.mxu0
    %v92 = vadd.f32 %v65, %v91
    %93 = vmatmul.f32.gmra.mxu0 %v72
    %v94 = vpop.f32.mrf.mxu0
    %v95 = vadd.f32 %v65, %v94
    %96 = vdwg.mxu0
    %v97 = vtanh.pop %v92
    %v98 = vtanh.pop %v95
    %v99 = vld [vmem:[%s4] sm:$0x1]
    %v101 = vperm.slane %v99, 0
    %v103 = vmul.f32 %v97, %v101
    %v104 = vmul.f32 %v98, %v101
    %v105 = vsel %vm67, %v103, 0.0
    %106 = vadd.xlane.f32.xlu0 %v105
    %v107 = vpop.xlane.xlu0 %106
    %v108 = vsel %vm67, %v104, 0.0
    %109 = vadd.xlane.f32.xlu0 %v108
    %v110 = vpop.xlane.xlu0 %109
    %s111 = sld [smem:[#allocation2]]
    %v112 = vstv %s111
    %v113 = vadd.f32 %v107, %v112
    %v114 = vadd.f32 %v110, %v112
    %v115 = vmul.f32 %v113, 1.442695
    %v116 = vpow.pop %v115
    %v117 = vmul.f32 %v114, 1.442695
    %v118 = vpow.pop %v117
    %v119 = vld [vmem:[%s1] sm:$0x3]
    %v121 = vperm.slane %v119, 0
    %v122 = vlaneseq
    %v123 = vshrl.u32 %v122, 7
    %125 = vset.pattern.permute.xlu0 %v123
    %126 = vperm.xlu0 %125, %v121
    %v127 = vpop.permute.xlu0 %126
    %v128 = vperm.slane %v119, 1
    %v129 = vlaneseq
    %v130 = vshrl.u32 %v129, 7
    %132 = vset.pattern.permute.xlu0 %v130
    %133 = vperm.xlu0 %132, %v128
    %v134 = vpop.permute.xlu0 %133
    %v137 = vmul.f32 %v116, %v127
    %v138 = vmul.f32 %v118, %v134
    %141 = vset.pattern.permute.xlu0 0
    %142 = vperm.xlu0 %141, %v137
    %v143 = vpop.permute.xlu0 %142
    %144 = vset.pattern.permute.xlu0 0
    %145 = vperm.xlu0 %144, %v138
    %v146 = vpop.permute.xlu0 %145
    %v147 = vlaneseq
    %v148 = vand.u32 %v147, 127
    %v149 = vperm.slane %v143, %v148
    %v150 = vperm.slane %v146, %v148
    %vm151 = vcmask 1041409
    %v152 = vsel %vm151, %v150, %v149
    %vm154 = vcmask 58368
    %v155 = vsel %vm154, %v152, 0.0
    %156 = vadd.xlane.f32.xlu0 %v155
    %v157 = vpop.xlane.xlu0 %156
    %v158 = vadd.f32 %v157, 1e-08
    %v160 = vperm.slane %v158, 0
    %v161 = vperm.slane %v158, 1
    %v164 = vrcp.pop %v160
    %v165 = vmul.f32 %v160, %v164
    %v166 = vsub.f32 1.0, %v165
    %v167 = vmul.f32 %v164, %v166
    %v168 = vadd.f32 %v164, %v167
    %vm169 = vweird.f32 %v160
    %vm170 = vweird.f32 %v164
    %vm171 = vmor %vm169, %vm170
    %v172 = vsel %vm171, %v164, %v168
    %v173 = vand.u32 2147483647, %v160
    %vm174 = vcmp.eq.f32.partialorder %v173, 8.507059e+37
    %v175 = vand.u32 %v160, 2147483648
    %v176 = vor.u32 1.1754944e-38, %v175
    %v177 = vsel %vm174, %v176, %v172
    %v178 = vmul.f32 %v137, %v177
    %v179 = vrcp.pop %v161
    %v180 = vmul.f32 %v161, %v179
    %v181 = vsub.f32 1.0, %v180
    %v182 = vmul.f32 %v179, %v181
    %v183 = vadd.f32 %v179, %v182
    %vm184 = vweird.f32 %v161
    %vm185 = vweird.f32 %v179
    %vm186 = vmor %vm184, %vm185
    %v187 = vsel %vm186, %v179, %v183
    %v188 = vand.u32 2147483647, %v161
    %vm189 = vcmp.eq.f32.partialorder %v188, 8.507059e+37
    %v190 = vand.u32 %v161, 2147483648
    %v191 = vor.u32 1.1754944e-38, %v190
    %v192 = vsel %vm189, %v191, %v187
    %v193 = vmul.f32 %v138, %v192
    %195 = vset.pattern.permute.xlu0 0
    %196 = vperm.xlu0 %195, %v178
    %v197 = vpop.permute.xlu0 %196
    %200 = vset.pattern.permute.xlu0 0
    %201 = vperm.xlu0 %200, %v193
    %v202 = vpop.permute.xlu0 %201
    %v204 = vmul.f32 %v197, %v57
    %v205 = vmul.f32 %v202, %v58
    %v206 = vsel %vm67, %v204, 0.0
    %v207 = vrot.slane %v206, 4
    %v208 = vadd.f32 %v206, %v207
    %v209 = vrot.slane %v208, 2
    %v210 = vadd.f32 %v208, %v209
    %v211 = vrot.slane %v210, 1
    %v212 = vadd.f32 %v210, %v211
    %v213 = vsel %vm67, %v205, 0.0
    %v214 = vrot.slane %v213, 4
    %v215 = vadd.f32 %v213, %v214
    %v216 = vrot.slane %v215, 2
    %v217 = vadd.f32 %v215, %v216
    %v218 = vrot.slane %v217, 1
    %v219 = vadd.f32 %v217, %v218
    %v222 = vsel %vm151, %v219, %v212
    %vm224 = vcmask 254976
    %225 = vst.msk [vmem:[#allocation8] sm:$0x3] %vm224, %v222
    // Predicated region
    $region34: #{tpu_custom_call.1} parent=1 // pred_check
      _
    $region35: #{tpu_custom_call.1} parent=1 // pred_check_branch
      %227 = sbr.rel (0) target = $region37
    $region36: #{tpu_custom_call.1} parent=1 // pred_region
      %229 = vsyncadd [#allocation5], 0
      %s231 = sshll.u32 [#allocation8], 4
      %s232 = int_to_ptr.vmem [resolvable:$true] %s231
      %s233 = sshll.u32 %s6, 4
      %s234 = int_to_ptr.hbm [resolvable:$true] %s233
      %236 = dma.vmem_to_hbm [thread:$0]  %s232, 32, %s234, [#allocation5]
    $region37: #{tpu_custom_call.1} parent=1 // pred_fallthru
      _
    // Predicated region
    $region38: #{tpu_custom_call.1} parent=1 // pred_check
      _
    $region39: #{tpu_custom_call.1} parent=1 // pred_check_branch
      %238 = sbr.rel (0) target = $region41
    $region40: #{tpu_custom_call.1} parent=1 // pred_region
      %240 = dma.done [#allocation5], 32
    $region41: #{tpu_custom_call.1} parent=1 // pred_fallthru
      _
    %241 = vsyncpa [#allocation4], 1
    %242 = vsyncpa [#allocation7], 1
    %243 = vsyncpa [#allocation5], 1

</llo_original>
